<compile_context>
chip_gen: v7x
topology: tpu7x:2x2x1
jax: 0.10.0
libtpu: 0.0.40
codegen_flags: <defaults>
</compile_context>

<pallas_src>
import functools
import math

import jax
import jax.numpy as jnp
from jax import lax
from jax.experimental import pallas as pl
from jax.experimental.pallas import tpu as pltpu

LN_EPS = 1e-5
_VMEM_LIMIT_BYTES = 48 * 1024 * 1024  # headroom under v7x 64 MiB physical VMEM


def _round_up(a: int, b: int) -> int:
    return ((a + b - 1) // b) * b


def _tile_sizes(rows, d_in, d_out, tm_target, tn_target, tk_target):
    """Pick (8,128)-legal, MXU-friendly tiles; tk/d_in_p chosen so K divides evenly."""
    tm = tm_target if rows >= tm_target else rows          # full dim if small
    tn = tn_target if d_out >= tn_target else d_out        # full dim if small
    if d_in > tk_target:
        tk = tk_target
        d_in_p = _round_up(d_in, tk)                        # zero-padded K
    else:
        tk = d_in                                           # single full-K block
        d_in_p = d_in
    return tm, tn, tk, d_in_p


# ---------------------------------------------------------------------------
# LayerNorm prologue kernel: f32 LN (identity affine) -> bf16, zero-fill K pad.
# ---------------------------------------------------------------------------
def _layernorm_kernel(x_ref, o_ref):
    x = x_ref[...].astype(jnp.float32)
    # One-pass stats: var = E[x^2] - mean^2 (clamped for numerical safety).
    mean = jnp.mean(x, axis=-1, keepdims=True)
    mean_sq = jnp.mean(x * x, axis=-1, keepdims=True)
    var = jnp.maximum(mean_sq - mean * mean, 0.0)
    xn = (x - mean) * lax.rsqrt(var + LN_EPS)

    d_in = x_ref.shape[-1]
    d_in_p = o_ref.shape[-1]
    o_ref[:, :d_in] = xn.astype(o_ref.dtype)
    if d_in_p > d_in:  # static: zero-fill K padding so padded K blocks contribute 0
        o_ref[:, d_in:] = jnp.zeros((o_ref.shape[0], d_in_p - d_in), o_ref.dtype)


def _layernorm_bf16(x2d, d_in_p, tm):
    rows, d_in = x2d.shape
    return pl.pallas_call(
        _layernorm_kernel,
        out_shape=jax.ShapeDtypeStruct((rows, d_in_p), jnp.bfloat16),
        grid_spec=pl.GridSpec(
            grid=(pl.cdiv(rows, tm),),
            in_specs=[pl.BlockSpec((tm, d_in), lambda r: (r, 0))],
            out_specs=pl.BlockSpec((tm, d_in_p), lambda r: (r, 0)),
        ),
        compiler_params=pltpu.CompilerParams(
            dimension_semantics=("parallel",),
            vmem_limit_bytes=_VMEM_LIMIT_BYTES,
        ),
    )(x2d)


# ---------------------------------------------------------------------------
# K-tiled matmul kernel: bf16 x_norm @ bf16 sign(W).T, f32 accumulate,
# fused (gamma*absmax) * acc + beta epilogue at the last K step.
# ---------------------------------------------------------------------------
def _bitlinear_matmul_kernel(xn_ref, wt_ref, sb_ref, o_ref, acc_ref):
    k = pl.program_id(2)

    @pl.when(k == 0)
    def _():
        acc_ref[...] = jnp.zeros_like(acc_ref)

    acc_ref[...] += jnp.dot(
        xn_ref[...], wt_ref[...], preferred_element_type=jnp.float32
    )

    @pl.when(k == pl.num_programs(2) - 1)
    def _():
        scale = sb_ref[0:1, :]  # gamma * absmax(|W|)
        bias = sb_ref[1:2, :]   # beta
        o_ref[...] = (acc_ref[...] * scale + bias).astype(o_ref.dtype)


def _bitlinear_matmul(xn, wt_q, scale_bias, out_dtype, tm, tn, tk):
    rows, d_in_p = xn.shape
    d_out = wt_q.shape[1]
    grid = (pl.cdiv(rows, tm), pl.cdiv(d_out, tn), d_in_p // tk)
    return pl.pallas_call(
        _bitlinear_matmul_kernel,
        out_shape=jax.ShapeDtypeStruct((rows, d_out), out_dtype),
        grid_spec=pltpu.PrefetchScalarGridSpec(
            num_scalar_prefetch=0,
            grid=grid,
            in_specs=[
                pl.BlockSpec((tm, tk), lambda r, n, k: (r, k)),
                pl.BlockSpec((tk, tn), lambda r, n, k: (k, n)),
                pl.BlockSpec((2, tn), lambda r, n, k: (0, n)),
            ],
            out_specs=pl.BlockSpec((tm, tn), lambda r, n, k: (r, n)),
            scratch_shapes=[pltpu.VMEM((tm, tn), jnp.float32)],
        ),
        compiler_params=pltpu.CompilerParams(
            dimension_semantics=("parallel", "parallel", "arbitrary"),
            vmem_limit_bytes=_VMEM_LIMIT_BYTES,
        ),
    )(xn, wt_q, scale_bias)


# ---------------------------------------------------------------------------
# Weight-side preprocessing (one fused pass over W); cache this for inference.
# ---------------------------------------------------------------------------
def quantize_bitlinear_weights(weight, gamma, beta, d_in_p):
    """Returns (sign(W).T padded to d_in_p as bf16, packed (2, d_out) scale/bias)."""
    w = weight.astype(jnp.float32)
    absmax = jnp.max(jnp.abs(w))
    wt_q = jnp.sign(w).astype(jnp.bfloat16).T  # (d_in, d_out); {-1,0,+1} exact in bf16
    d_in = weight.shape[1]
    if d_in_p != d_in:
        wt_q = jnp.pad(wt_q, ((0, d_in_p - d_in), (0, 0)))  # zero K padding
    scale_bias = jnp.stack(
        [gamma.astype(jnp.float32) * absmax, beta.astype(jnp.float32)], axis=0
    )  # (2, d_out)
    return wt_q, scale_bias


@functools.partial(jax.jit, static_argnames=("tm_target", "tn_target", "tk_target"))
def bitlinear_forward(
    x, weight, gamma, beta, *, tm_target=256, tn_target=512, tk_target=512
):
    """x: (..., d_in); weight: (d_out, d_in); gamma/beta: (d_out,)."""
    d_out, d_in = weight.shape
    lead = x.shape[:-1]
    rows = math.prod(lead)

    tm, tn, tk, d_in_p = _tile_sizes(
        rows, d_in, d_out, tm_target, tn_target, tk_target
    )

    # TODO(synk): for inference with static weights, call quantize_bitlinear_weights
    # once outside the per-call path and reuse (wt_q, scale_bias).
    wt_q, scale_bias = quantize_bitlinear_weights(weight, gamma, beta, d_in_p)

    x2d = x.reshape(rows, d_in)
    xn = _layernorm_bf16(x2d, d_in_p, tm)                        # (rows, d_in_p) bf16
    out2d = _bitlinear_matmul(xn, wt_q, scale_bias, x.dtype, tm, tn, tk)
    return out2d.reshape(*lead, d_out)


# ---------------------------------------------------------------------------
# Pure-JAX f32 reference of the PyTorch forward.
# ---------------------------------------------------------------------------
def bitlinear_reference(x, weight, gamma, beta):
    mean = jnp.mean(x, axis=-1, keepdims=True)
    var = jnp.mean((x - mean) ** 2, axis=-1, keepdims=True)
    xn = (x - mean) / jnp.sqrt(var + LN_EPS)
    absmax = jnp.max(jnp.abs(weight))
    qw = jnp.sign(weight)
    out = jnp.dot(xn, qw.T, precision=lax.Precision.HIGHEST)
    return out * absmax * gamma + beta


if __name__ == "__main__":
    # --- Test 1: module-spec-sized shapes (single tile on every axis). ---
    batch, seq, d_input, d_output = 2, 8, 32, 64
    key = jax.random.PRNGKey(0)
    kx, kw, kx2, kw2 = jax.random.split(key, 4)

    x = jax.random.normal(kx, (batch, seq, d_input), dtype=jnp.float32)
    weight = jax.random.normal(kw, (d_output, d_input), dtype=jnp.float32)
    gamma = jnp.ones((d_output,), dtype=jnp.float32)
    beta = jnp.zeros((d_output,), dtype=jnp.float32)

    out = jax.block_until_ready(bitlinear_forward(x, weight, gamma, beta))
    ref = bitlinear_reference(x, weight, gamma, beta)
    assert out.shape == (batch, seq, d_output)
    # Only deviation from the f32 reference is the bf16 cast of x_norm on the MXU
    # activation side; error ~ sqrt(d_in) * 2^-9 * absmax (small at d_in=32).
    assert jnp.allclose(out, ref, atol=1e-1, rtol=1e-2), "mismatch vs f32 reference"

    # --- Test 2: exercise the tiled paths (multiple row/N/K tiles, ragged edges,
    #     K zero-padding: rows=300 -> 2 row tiles, d_out=520 -> 2 N tiles,
    #     d_in=600 -> tk=512, d_in_p=1024 -> 2 K tiles). ---
    b2, s2, din2, dout2 = 2, 150, 600, 520
    x2 = jax.random.normal(kx2, (b2, s2, din2), dtype=jnp.float32)
    w2 = jax.random.normal(kw2, (dout2, din2), dtype=jnp.float32)
    g2 = 1.0 + 0.1 * jax.random.normal(jax.random.PRNGKey(1), (dout2,), jnp.float32)
    b2v = 0.1 * jax.random.normal(jax.random.PRNGKey(2), (dout2,), jnp.float32)

    out2 = jax.block_until_ready(bitlinear_forward(x2, w2, g2, b2v))
    ref2 = bitlinear_reference(x2, w2, g2, b2v)
    assert out2.shape == (b2, s2, dout2)
    rel_err = jnp.max(jnp.abs(out2 - ref2)) / jnp.max(jnp.abs(ref2))
    assert rel_err < 1e-2, "tiled-path mismatch vs f32 reference"

    print("KERNEL_OK")
</pallas_src>

<mosaic_0001>
module attributes {stable_mosaic.version = 11 : i64} {
  func.func @_layernorm_kernel(%arg0: i32, %arg1: memref<16x32xf32, #tpu.memory_space<vmem>>, %arg2: memref<16x32xbf16, #tpu.memory_space<vmem>>) attributes {dimension_semantics = [#tpu.dimension_semantics<parallel>], iteration_bounds = array<i64: 1>, scalar_prefetch = 0 : i64, scratch_operands = 0 : i64, tpu.core_type = #tpu.core_type<tc>, window_params = [{transform_indices = @transform_0, window_bounds = array<i64: 16, 32>}, {transform_indices = @transform_1, window_bounds = array<i64: 16, 32>}]} {
    %c0 = arith.constant 0 : index
    %c0_0 = arith.constant 0 : index
    %0 = vector.load %arg1[%c0, %c0_0] : memref<16x32xf32, #tpu.memory_space<vmem>>, vector<16x32xf32>
    %cst = arith.constant dense<0.000000e+00> : vector<16xf32>
    %1 = vector.multi_reduction <add>, %0, %cst [1] : vector<16x32xf32> to vector<16xf32>
    %2 = vector.shape_cast %1 : vector<16xf32> to vector<16x1xf32>
    %cst_1 = arith.constant 3.200000e+01 : f32
    %3 = vector.broadcast %cst_1 : f32 to vector<16x1xf32>
    %4 = arith.divf %2, %3 : vector<16x1xf32>
    %5 = arith.mulf %0, %0 : vector<16x32xf32>
    %cst_2 = arith.constant dense<0.000000e+00> : vector<16xf32>
    %6 = vector.multi_reduction <add>, %5, %cst_2 [1] : vector<16x32xf32> to vector<16xf32>
    %7 = vector.shape_cast %6 : vector<16xf32> to vector<16x1xf32>
    %cst_3 = arith.constant 3.200000e+01 : f32
    %8 = vector.broadcast %cst_3 : f32 to vector<16x1xf32>
    %9 = arith.divf %7, %8 : vector<16x1xf32>
    %10 = arith.mulf %4, %4 : vector<16x1xf32>
    %11 = arith.subf %9, %10 : vector<16x1xf32>
    %cst_4 = arith.constant 0.000000e+00 : f32
    %12 = vector.broadcast %cst_4 : f32 to vector<16x1xf32>
    %13 = arith.maximumf %11, %12 : vector<16x1xf32>
    %14 = vector.broadcast %4 : vector<16x1xf32> to vector<16x32xf32>
    %15 = arith.subf %0, %14 : vector<16x32xf32>
    %cst_5 = arith.constant 9.99999974E-6 : f32
    %16 = vector.broadcast %cst_5 : f32 to vector<16x1xf32>
    %17 = arith.addf %13, %16 : vector<16x1xf32>
    %18 = math.rsqrt %17 : vector<16x1xf32>
    %19 = vector.broadcast %18 : vector<16x1xf32> to vector<16x32xf32>
    %20 = arith.mulf %15, %19 : vector<16x32xf32>
    %21 = arith.truncf %20 : vector<16x32xf32> to vector<16x32xbf16>
    %c0_6 = arith.constant 0 : index
    %c0_7 = arith.constant 0 : index
    %22 = vector.load %arg2[%c0_6, %c0_7] : memref<16x32xbf16, #tpu.memory_space<vmem>>, vector<16x32xbf16>
    tpu.vector_store %arg2[%c0_6, %c0_7], %21 {strides = array<i32>} : memref<16x32xbf16, #tpu.memory_space<vmem>>, vector<16x32xbf16>,
    return
  }
  func.func @transform_0(%arg0: i32) -> (i32, i32) {
    %c0_i32 = arith.constant 0 : i32
    %c0_i32_0 = arith.constant 0 : i32
    return %arg0, %c0_i32 : i32, i32
  }
  func.func @transform_1(%arg0: i32) -> (i32, i32) {
    %c0_i32 = arith.constant 0 : i32
    %c0_i32_0 = arith.constant 0 : i32
    return %arg0, %c0_i32 : i32, i32
  }
}

module attributes {stable_mosaic.version = 11 : i64} {
  func.func @_bitlinear_matmul_kernel(%arg0: i32, %arg1: i32, %arg2: i32, %arg3: memref<16x32xbf16, #tpu.memory_space<vmem>>, %arg4: memref<32x64xbf16, #tpu.memory_space<vmem>>, %arg5: memref<2x64xf32, #tpu.memory_space<vmem>>, %arg6: memref<16x64xf32, #tpu.memory_space<vmem>>, %arg7: memref<16x64xf32, #tpu.memory_space<vmem>>) attributes {dimension_semantics = [#tpu.dimension_semantics<parallel>, #tpu.dimension_semantics<parallel>, #tpu.dimension_semantics<arbitrary>], iteration_bounds = array<i64: 1, 1, 1>, scalar_prefetch = 0 : i64, scratch_operands = 1 : i64, tpu.core_type = #tpu.core_type<tc>, window_params = [{transform_indices = @transform_0, window_bounds = array<i64: 16, 32>}, {transform_indices = @transform_1, window_bounds = array<i64: 32, 64>}, {transform_indices = @transform_2, window_bounds = array<i64: 2, 64>}, {transform_indices = @transform_3, window_bounds = array<i64: 16, 64>}]} {
    %c0_i32 = arith.constant 0 : i32
    %0 = arith.cmpi eq, %arg2, %c0_i32 : i32
    %1 = arith.extui %0 : i1 to i32
    %c0_i32_0 = arith.constant 0 : i32
    %2 = arith.cmpi ne, %1, %c0_i32_0 : i32
    scf.if %2 {
      %cst_10 = arith.constant 0.000000e+00 : f32
      %12 = vector.broadcast %cst_10 : f32 to vector<16x64xf32>
      %c0_11 = arith.constant 0 : index
      %c0_12 = arith.constant 0 : index
      %13 = vector.load %arg7[%c0_11, %c0_12] : memref<16x64xf32, #tpu.memory_space<vmem>>, vector<16x64xf32>
      tpu.vector_store %arg7[%c0_11, %c0_12], %12 {strides = array<i32>} : memref<16x64xf32, #tpu.memory_space<vmem>>, vector<16x64xf32>,
    } else {
    }
    %c0 = arith.constant 0 : index
    %c0_1 = arith.constant 0 : index
    %3 = vector.load %arg7[%c0, %c0_1] : memref<16x64xf32, #tpu.memory_space<vmem>>, vector<16x64xf32>
    %c0_2 = arith.constant 0 : index
    %c0_3 = arith.constant 0 : index
    %4 = vector.load %arg3[%c0_2, %c0_3] : memref<16x32xbf16, #tpu.memory_space<vmem>>, vector<16x32xbf16>
    %c0_4 = arith.constant 0 : index
    %c0_5 = arith.constant 0 : index
    %5 = vector.load %arg4[%c0_4, %c0_5] : memref<32x64xbf16, #tpu.memory_space<vmem>>, vector<32x64xbf16>
    %cst = arith.constant dense<0.000000e+00> : vector<16x64xf32>
    %6 = tpu.matmul %4, %5, %cst {dimension_numbers = #tpu.dot_dimension_numbers<[1], [0], [0], [1], [0, 0, 1, 1], [], []>} : vector<16x32xbf16>, vector<32x64xbf16>, vector<16x64xf32> -> vector<16x64xf32>
    %7 = arith.addf %3, %6 : vector<16x64xf32>
    %c0_6 = arith.constant 0 : index
    %c0_7 = arith.constant 0 : index
    %8 = vector.load %arg7[%c0_6, %c0_7] : memref<16x64xf32, #tpu.memory_space<vmem>>, vector<16x64xf32>
    tpu.vector_store %arg7[%c0_6, %c0_7], %7 {strides = array<i32>} : memref<16x64xf32, #tpu.memory_space<vmem>>, vector<16x64xf32>,
    %c0_i32_8 = arith.constant 0 : i32
    %9 = arith.cmpi eq, %arg2, %c0_i32_8 : i32
    %10 = arith.extui %9 : i1 to i32
    %c0_i32_9 = arith.constant 0 : i32
    %11 = arith.cmpi ne, %10, %c0_i32_9 : i32
    scf.if %11 {
      %c0_10 = arith.constant 0 : index
      %c0_11 = arith.constant 0 : index
      %12 = vector.load %arg5[%c0_10, %c0_11] : memref<2x64xf32, #tpu.memory_space<vmem>>, vector<1x64xf32>
      %c1 = arith.constant 1 : index
      %c0_12 = arith.constant 0 : index
      %13 = vector.load %arg5[%c1, %c0_12] : memref<2x64xf32, #tpu.memory_space<vmem>>, vector<1x64xf32>
      %c0_13 = arith.constant 0 : index
      %c0_14 = arith.constant 0 : index
      %14 = vector.load %arg7[%c0_13, %c0_14] : memref<16x64xf32, #tpu.memory_space<vmem>>, vector<16x64xf32>
      %15 = vector.broadcast %12 : vector<1x64xf32> to vector<16x64xf32>
      %16 = arith.mulf %14, %15 : vector<16x64xf32>
      %17 = vector.broadcast %13 : vector<1x64xf32> to vector<16x64xf32>
      %18 = arith.addf %16, %17 : vector<16x64xf32>
      %c0_15 = arith.constant 0 : index
      %c0_16 = arith.constant 0 : index
      %19 = vector.load %arg6[%c0_15, %c0_16] : memref<16x64xf32, #tpu.memory_space<vmem>>, vector<16x64xf32>
      tpu.vector_store %arg6[%c0_15, %c0_16], %18 {strides = array<i32>} : memref<16x64xf32, #tpu.memory_space<vmem>>, vector<16x64xf32>,
    } else {
    }
    return
  }
  func.func @transform_0(%arg0: i32, %arg1: i32, %arg2: i32) -> (i32, i32) {
    %c0_i32 = arith.constant 0 : i32
    return %arg0, %arg2 : i32, i32
  }
  func.func @transform_1(%arg0: i32, %arg1: i32, %arg2: i32) -> (i32, i32) {
    %c0_i32 = arith.constant 0 : i32
    return %arg2, %arg1 : i32, i32
  }
  func.func @transform_2(%arg0: i32, %arg1: i32, %arg2: i32) -> (i32, i32) {
    %c0_i32 = arith.constant 0 : i32
    %c0_i32_0 = arith.constant 0 : i32
    return %c0_i32, %arg1 : i32, i32
  }
  func.func @transform_3(%arg0: i32, %arg1: i32, %arg2: i32) -> (i32, i32) {
    %c0_i32 = arith.constant 0 : i32
    return %arg0, %arg1 : i32, i32
  }
}

</mosaic_0001>

<llo_original>
// kernel: bitlinear_forward.3
$region0: #{bitlinear_forward.3}
  #allocation0 [shape = 'u32[]', space=smem, size = 0x4, offset = 0x4, fixed_abs, tag = 'smem constant byte address 0x4 - core index']
  #allocation1 [shape = 'u32[144,128]{1,0:T(1,128)}', space=vmem, size = 0x12000, scoped, tag = 'internal scratch']
  #allocation2 [shape = 'f32[16,64]{1,0:T(8,128)}', space=vmem, size = 0x2000, scoped, tag = 'scratch operand']
  %s0 = inlined_call_operand.vmem [shape: bf16[16,32], index: 0, kind: input, shape index: {}]
  %s1 = inlined_call_operand.vmem [shape: bf16[32,64], index: 1, kind: input, shape index: {}]
  %s2 = inlined_call_operand.vmem [shape: f32[2,64], index: 2, kind: input, shape index: {}]
  %s3 = inlined_call_operand.hbm [shape: f32[16,64], index: 3, kind: output, shape index: {}]
  %s4 = sld [smem:[#allocation0]]
  $region30: #{bitlinear_forward.3} parent=0
    _
  %s6 = ssub.s32 1, %s4
  %s7 = scalar_select 0, %s6, %s4
  $region1: #{bitlinear_forward.3} parent=0
    #allocation3 [shape = 'u8[8192]{0}', space=vmem, size = 0x2000, scoped, tag = 'output window, operand 0, single buffered']
    #allocation4 [shape = 's32[1]{0}', space=sflag, size = 0x4, scoped, tag = 'scoped memory for bitlinear_forward.3']
    %8 = vsyncpa [#allocation4], 0
    // Predicated region
    $region2: #{bitlinear_forward.3} parent=1 // pred_check
      _
    $region3: #{bitlinear_forward.3} parent=1 // pred_check_branch
      %10 = sbr.rel (0) target = $region5
    $region4: #{bitlinear_forward.3} parent=1 // pred_region
      _
    $region5: #{bitlinear_forward.3} parent=1 // pred_fallthru
      _
    // Predicated region
    $region6: #{bitlinear_forward.3} parent=1 // pred_check
      _
    $region7: #{bitlinear_forward.3} parent=1 // pred_check_branch
      %12 = sbr.rel (0) target = $region9
    $region8: #{bitlinear_forward.3} parent=1 // pred_region
      _
    $region9: #{bitlinear_forward.3} parent=1 // pred_fallthru
      _
    // Predicated region
    $region10: #{bitlinear_forward.3} parent=1 // pred_check
      _
    $region11: #{bitlinear_forward.3} parent=1 // pred_check_branch
      %14 = sbr.rel (0) target = $region13
    $region12: #{bitlinear_forward.3} parent=1 // pred_region
      _
    $region13: #{bitlinear_forward.3} parent=1 // pred_fallthru
      _
    %p16 = scmp.eq.s32.totalorder 0, 0
    // Predicated region
    $region14: #{bitlinear_forward.3} parent=1 // pred_check
      %p17 = pneg %p16
    $region15: #{bitlinear_forward.3} parent=1 // pred_check_branch
      %19 = sbr.rel (%p17) target = $region17
    $region16: #{bitlinear_forward.3} parent=1 // pred_region
      %vm20 = vcmask 523264
      %21 = vst.msk [vmem:[#allocation2] sm:$0xff] %vm20, 0.0
      %22 = vst.msk [vmem:[#allocation2 + $0x8] sm:$0xff] %vm20, 0.0
    $region17: #{bitlinear_forward.3} parent=1 // pred_fallthru
      _
    %v23 = vld [vmem:[#allocation2] sm:$0xff]
    %v24 = vld [vmem:[#allocation2 + $0x8] sm:$0xff]
    %v25 = vld [vmem:[%s0] sm:$0xf]
    %v26 = vld [vmem:[%s0 + $0x4] sm:$0xf]
    %v27 = vld [vmem:[%s1] sm:$0xf]
    %v28 = vld [vmem:[%s1 + $0x4] sm:$0xf]
    %v29 = vld [vmem:[%s1 + $0x8] sm:$0xf]
    %v30 = vld [vmem:[%s1 + $0xc] sm:$0xf]
    %v33 = vunpack.c.l.b16 %v25
    %v34 = vunpack.c.l.b16 %v26
    %v35 = vpack.c.b16 %v34, %v33
    %v40 = vunpack.c.l.b16 %v27
    %v41 = vunpack.c.l.b16 %v28
    %v42 = vunpack.c.l.b16 %v29
    %v43 = vunpack.c.l.b16 %v30
    %v44 = vpack.c.b16 %v41, %v40
    %v45 = vpack.c.b16 %v43, %v42
    %vm48 = vcmask 261120
    %v50 = vsel %vm48, %v35, 0
    %52 = vmatprep.subr.bf16.mxu0 0
    %53 = vmatpush1.bf16.msra.mxu0 %v44
    %54 = vmatprep.subr.bf16.mxu0 0
    %55 = vmatpush1.bf16.msra.mxu0 %v45
    %56 = vmatprep.subr.bf16.mxu0 0
    %57 = vmatpush1.bf16.msra.mxu0 0
    %58 = vmatprep.subr.bf16.mxu0 0
    %59 = vmatpush1.bf16.msra.mxu0 0
    %60 = vmatprep.subr.bf16.mxu0 0
    %61 = vmatpush1.bf16.msra.mxu0 0
    %62 = vmatprep.subr.bf16.mxu0 0
    %63 = vmatpush1.bf16.msra.mxu0 0
    %64 = vmatprep.subr.bf16.mxu0 0
    %65 = vmatpush1.bf16.msra.mxu0 0
    %66 = vmatprep.subr.bf16.mxu0 0
    %67 = vmatpush1.bf16.msra.mxu0 0
    %68 = vmatprep.subr.bf16.mxu0 0
    %69 = vmatpush1.bf16.msra.mxu0 0
    %70 = vmatprep.subr.bf16.mxu0 0
    %71 = vmatpush1.bf16.msra.mxu0 0
    %72 = vmatprep.subr.bf16.mxu0 0
    %73 = vmatpush1.bf16.msra.mxu0 0
    %74 = vmatprep.subr.bf16.mxu0 0
    %75 = vmatpush1.bf16.msra.mxu0 0
    %76 = vmatprep.subr.bf16.mxu0 0
    %77 = vmatpush1.bf16.msra.mxu0 0
    %78 = vmatprep.subr.bf16.mxu0 0
    %79 = vmatpush1.bf16.msra.mxu0 0
    %80 = vmatprep.subr.bf16.mxu0 0
    %81 = vmatpush1.bf16.msra.mxu0 0
    %82 = vmatprep.subr.bf16.mxu0 0
    %83 = vmatpush1.bf16.msra.mxu0 0
    %84 = vmatprep.mubr.bf16.mxu0 0
    %85 = vmatmul.mubr.bf16.gmra.mrb[0].mxu0 %v50
    %v86 = vpop.f32.mrb[0].mxu0
    %v87 = vadd.f32 0.0, %v86
    %v88 = vpop.f32.mrb[0].mxu0
    %v89 = vpop.f32.mrb[0].mxu0
    %v90 = vadd.f32 0.0, %v89
    %v91 = vpop.f32.mrb[0].mxu0
    %92 = vdwg.mxu0
    %v93 = vadd.f32 %v23, %v87
    %v94 = vadd.f32 %v24, %v90
    %vm95 = vcmask 523264
    %96 = vst.msk [vmem:[#allocation2] sm:$0xff] %vm95, %v93
    %97 = vst.msk [vmem:[#allocation2 + $0x8] sm:$0xff] %vm95, %v94
    // Predicated region
    $region18: #{bitlinear_forward.3} parent=1 // pred_check
      %p98 = pneg %p16
    $region19: #{bitlinear_forward.3} parent=1 // pred_check_branch
      %100 = sbr.rel (%p98) target = $region21
    $region20: #{bitlinear_forward.3} parent=1 // pred_region
      %v101 = vld [vmem:[%s2] sm:$0x1]
      %v102 = vld [vmem:[%s2 + $0x1] sm:$0x1]
      %v103 = vld [vmem:[#allocation2] sm:$0xff]
      %v104 = vld [vmem:[#allocation2 + $0x8] sm:$0xff]
      %v105 = vlaneseq
      %v106 = vshrl.u32 %v105, 7
      %v107 = vsub.s32 0, %v106
      %v108 = vrot.slane %v101, %v107
      %v109 = vmul.f32 %v103, %v108
      %v110 = vmul.f32 %v104, %v108
      %v111 = vlaneseq
      %v112 = vshrl.u32 %v111, 7
      %v113 = vsub.s32 0, %v112
      %v114 = vrot.slane %v102, %v113
      %v115 = vadd.f32 %v109, %v114
      %v116 = vadd.f32 %v110, %v114
      %117 = vst.msk [vmem:[#allocation3] sm:$0xff] %vm95, %v115
      %118 = vst.msk [vmem:[#allocation3 + $0x8] sm:$0xff] %vm95, %v116
    $region21: #{bitlinear_forward.3} parent=1 // pred_fallthru
      _
    // Predicated region
    $region22: #{bitlinear_forward.3} parent=1 // pred_check
      _
    $region23: #{bitlinear_forward.3} parent=1 // pred_check_branch
      %120 = sbr.rel (0) target = $region25
    $region24: #{bitlinear_forward.3} parent=1 // pred_region
      %s122 = ssub.s32 256, 256
      %123 = vsyncadd [#allocation4], %s122
      %s124 = sshll.u32 [#allocation3], 4
      %s125 = int_to_ptr.vmem [resolvable:$true] %s124
      %130 = dma.vmem_to_hbm [thread:$0]  %s125, 256, %s3, [#allocation4], 128, 128, 8
    $region25: #{bitlinear_forward.3} parent=1 // pred_fallthru
      _
    // Predicated region
    $region26: #{bitlinear_forward.3} parent=1 // pred_check
      _
    $region27: #{bitlinear_forward.3} parent=1 // pred_check_branch
      %132 = sbr.rel (0) target = $region29
    $region28: #{bitlinear_forward.3} parent=1 // pred_region
      %133 = dma.done [#allocation4], 256
    $region29: #{bitlinear_forward.3} parent=1 // pred_fallthru
      _
    %134 = vsyncpa [#allocation4], 1

// kernel: bitlinear_forward.2
$region0: #{bitlinear_forward.2}
  #allocation0 [shape = 'u32[]', space=smem, size = 0x4, offset = 0x4, fixed_abs, tag = 'smem constant byte address 0x4 - core index']
  #allocation1 [shape = 'u32[144,128]{1,0:T(1,128)}', space=vmem, size = 0x12000, scoped, tag = 'internal scratch']
  %s0 = inlined_call_operand.hbm [shape: f32[16,32], index: 0, kind: input, shape index: {}]
  %s1 = inlined_call_operand.vmem [shape: bf16[16,32], index: 1, kind: output, shape index: {}]
  %s2 = sld [smem:[#allocation0]]
  $region18: #{bitlinear_forward.2} parent=0
    _
  %s4 = ssub.s32 1, %s2
  %s5 = scalar_select 0, %s4, %s2
  $region1: #{bitlinear_forward.2} parent=0
    #allocation2 [shape = 'u8[8192]{0}', space=vmem, size = 0x2000, scoped, tag = 'input window, operand 0, single buffered']
    #allocation3 [shape = 's32[1]{0}', space=sflag, size = 0x4, scoped, tag = 'scoped memory for bitlinear_forward.2']
    %6 = vsyncpa [#allocation3], 0
    // Predicated region
    $region2: #{bitlinear_forward.2} parent=1 // pred_check
      _
    $region3: #{bitlinear_forward.2} parent=1 // pred_check_branch
      %8 = sbr.rel (0) target = $region5
    $region4: #{bitlinear_forward.2} parent=1 // pred_region
      %s10 = ssub.s32 256, 256
      %11 = vsyncadd [#allocation3], %s10
      %s12 = sshll.u32 [#allocation2], 4
      %s13 = int_to_ptr.vmem [resolvable:$true] %s12
      %18 = dma.hbm_to_vmem [thread:$0]  %s0, 256, %s13, [#allocation3], 128, 128, 8
    $region5: #{bitlinear_forward.2} parent=1 // pred_fallthru
      _
    // Predicated region
    $region6: #{bitlinear_forward.2} parent=1 // pred_check
      _
    $region7: #{bitlinear_forward.2} parent=1 // pred_check_branch
      %20 = sbr.rel (0) target = $region9
    $region8: #{bitlinear_forward.2} parent=1 // pred_region
      %21 = dma.done [#allocation3], 256
    $region9: #{bitlinear_forward.2} parent=1 // pred_fallthru
      _
    %v22 = vld [vmem:[#allocation2] sm:$0xff]
    %v23 = vld [vmem:[#allocation2 + $0x8] sm:$0xff]
    %vm24 = vcmask 261120
    %v25 = vsel %vm24, %v22, 0.0
    %26 = vadd.xlane.f32.xlu0 %v25
    %v27 = vpop.xlane.xlu0 %26
    %v28 = vsel %vm24, %v23, 0.0
    %29 = vadd.xlane.f32.xlu0 %v28
    %v30 = vpop.xlane.xlu0 %29
    %v31 = vrcp.pop 32.0
    %v32 = vmul.f32 %v27, %v31
    %v33 = vmul.f32 %v30, %v31
    %v34 = vmul.f32 %v22, %v22
    %v35 = vmul.f32 %v23, %v23
    %v36 = vsel %vm24, %v34, 0.0
    %37 = vadd.xlane.f32.xlu0 %v36
    %v38 = vpop.xlane.xlu0 %37
    %v39 = vsel %vm24, %v35, 0.0
    %40 = vadd.xlane.f32.xlu0 %v39
    %v41 = vpop.xlane.xlu0 %40
    %v42 = vmul.f32 %v38, %v31
    %v43 = vmul.f32 %v41, %v31
    %v44 = vmul.f32 %v32, %v32
    %v45 = vmul.f32 %v33, %v33
    %v46 = vsub.f32 %v42, %v44
    %v47 = vsub.f32 %v43, %v45
    %v48 = vmax.f32 %v46, 0.0
    %v49 = vmax.f32 %v47, 0.0
    %v50 = vsub.f32 %v22, %v32
    %v51 = vsub.f32 %v23, %v33
    %v52 = vadd.f32 %v48, 1e-05
    %v53 = vadd.f32 %v49, 1e-05
    %v54 = vrsqrt.pop %v52
    %v55 = vrsqrt.pop %v53
    %v56 = vmul.f32 %v50, %v54
    %v57 = vmul.f32 %v51, %v55
    %v58 = vpack.c.bf16 %v57, %v56
    %v60 = vunpack.c.l.b16 %v58
    %v61 = vunpack.c.h.b16 %v58
    %v62 = vpack.c.b16 %v60, %v60
    %v63 = vpack.c.b16 %v61, %v61
    %vm66 = vcmask 257024
    %67 = vst.msk [vmem:[%s1] sm:$0xf] %vm66, %v62
    %68 = vst.msk [vmem:[%s1 + $0x4] sm:$0xf] %vm66, %v63
    // Predicated region
    $region10: #{bitlinear_forward.2} parent=1 // pred_check
      _
    $region11: #{bitlinear_forward.2} parent=1 // pred_check_branch
      %70 = sbr.rel (0) target = $region13
    $region12: #{bitlinear_forward.2} parent=1 // pred_region
      _
    $region13: #{bitlinear_forward.2} parent=1 // pred_fallthru
      _
    // Predicated region
    $region14: #{bitlinear_forward.2} parent=1 // pred_check
      _
    $region15: #{bitlinear_forward.2} parent=1 // pred_check_branch
      %72 = sbr.rel (0) target = $region17
    $region16: #{bitlinear_forward.2} parent=1 // pred_region
      _
    $region17: #{bitlinear_forward.2} parent=1 // pred_fallthru
      _
    %73 = vsyncpa [#allocation3], 1

</llo_original>
